<compile_context>
chip_gen: v6e
topology: v6e:2x2x1
jax: 0.10.0
libtpu: 0.0.40
codegen_flags: <defaults>
</compile_context>

<pallas_src>
import jax
import jax.numpy as jnp
from jax.experimental import pallas as pl
from jax.experimental.pallas import tpu as pltpu


# ---------------------------------------------------------------------------
# Fused kernel: neutralize (rank-K projection removal) + classifier head
# ---------------------------------------------------------------------------

def _sentdebias_kernel(v_ref, ut_ref, w_ref, utw_ref, b_ref, emb_ref, logits_ref):
    """Fused neutralize + classifier head (one batch tile per grid step).

    v_ref      : (TB, Hp)  embeddings tile (lane-padded hidden, stream dtype)
    ut_ref     : (K,  Hp)  bias subspace, pre-transposed (rows = components, f32)
    w_ref      : (Hp, Lp)  classifier weight (pre-transposed, stream dtype)
    utw_ref    : (K,  Lp)  precomputed U^T @ W  (classifier fold, stream dtype)
    b_ref      : (1,  Lp)  classifier bias (f32)
    emb_ref    : (TB, Hp)  debiased embeddings (output, stream dtype)
    logits_ref : (TB, Lp)  logits (output, stream dtype)
    """
    v = v_ref[...]
    vf = v.astype(jnp.float32)

    # Classifier main path: one well-shaped MXU matmul with matched operand
    # dtypes and f32 accumulation.  Independent of the projection thanks to
    # the algebraic fold logits = v@W - coeff@(U^T W) + b.
    logits = jnp.dot(v, w_ref[...], preferred_element_type=jnp.float32)

    ut = ut_ref[...].astype(jnp.float32)      # (K, Hp)
    utw = utw_ref[...].astype(jnp.float32)    # (K, Lp)

    # Rank-K projection on the VPU/XLU (K is tiny, typically 1).  Avoids two
    # MXU round-trips whose contraction dim would be K (~0% MXU utilization).
    # For large K (>~8) an MXU path would be preferable (vreg pressure from
    # the per-k full-width (TB, Hp) temporaries).
    proj = jnp.zeros_like(vf)
    for k in range(ut.shape[0]):                               # static unroll over K
        u_k = ut[k:k + 1, :]                                   # (1, Hp)
        coeff_k = jnp.sum(vf * u_k, axis=-1, keepdims=True)    # (TB, 1) XLU reduce
        proj = proj + coeff_k * u_k                            # VPU outer product
        logits = logits - coeff_k * utw[k:k + 1, :]            # rank-1 logits fix-up

    emb_ref[...] = (vf - proj).astype(emb_ref.dtype)
    logits_ref[...] = (logits + b_ref[...].astype(jnp.float32)).astype(logits_ref.dtype)


# ---------------------------------------------------------------------------
# Wrapper
# ---------------------------------------------------------------------------

def _round_up(x, m):
    return ((x + m - 1) // m) * m


def _vmem_budget_bytes():
    """Per-generation VMEM budget (~7/8 of physical), conservative fallback."""
    try:
        cap = int(pltpu.get_tpu_info().vmem_capacity_bytes)
    except Exception:
        cap = 64 * 1024 * 1024          # v7x-safe fallback
    return (cap * 7) // 8               # ~112 MiB on v5e/v6e, ~56 MiB on v7x


def sentdebias_forward(embeddings, bias_subspace, cls_w_t, cls_b, *,
                       block_b=2048, stream_dtype=None, donate_embeddings=False):
    """Fused SentDebias neutralize + classifier head via Pallas.

    embeddings    : (B, H) float32 or bf16
    bias_subspace : (H, K) float32
    cls_w_t       : (H, L) float32  (classifier weight, transposed)
    cls_b         : (1, L) float32
    stream_dtype  : dtype used to stream the big arrays through HBM (defaults
                    to embeddings.dtype; pass jnp.bfloat16 to halve HBM bytes,
                    math stays f32 inside the kernel).
    returns (debiased_embeddings (B, H), logits (B, L)) in stream_dtype.
    """
    B, H = embeddings.shape
    K = bias_subspace.shape[1]
    L = cls_w_t.shape[1]
    f32 = jnp.float32
    stream_dtype = jnp.dtype(embeddings.dtype if stream_dtype is None else stream_dtype)
    item = stream_dtype.itemsize

    # Lane-dense padding only when needed (H is usually already 768/1024).
    Hp = _round_up(H, 128)
    Lp = _round_up(L, 128)

    # ---- Budget-first batch tile derivation -------------------------------
    budget = _vmem_budget_bytes()
    # Resident weights (counted double-buffered in case the single-buffer hint
    # is unavailable) + double-buffered streamed rows (1 input + 2 output tiles).
    weight_bytes = 2 * (K * Hp * 4 + (Hp * Lp + K * Lp) * item + Lp * 4)
    row_bytes = 2 * (2 * Hp + Lp) * item
    headroom = 2 * 1024 * 1024
    tb_budget = max(8, ((budget - weight_bytes - headroom) // row_bytes) // 8 * 8)
    tb_cap = max(8, min(int(tb_budget), int(block_b)))
    if B <= 8:
        TB = B                                   # one block == full batch dim
    else:
        # >= 2 grid steps so v7x's two TensorCores can split the batch.
        n_steps = max(2, pl.cdiv(B, tb_cap))
        TB = min(tb_cap, _round_up(pl.cdiv(B, n_steps), 8))
    grid = (pl.cdiv(B, TB),)

    # ---- Operand preparation (skip copies when shapes/dtypes already fit) --
    if Hp != H:
        # Zero padding is exact: padded hidden columns of v/U/W are 0, so
        # coeff, proj and logits in the valid region are unchanged.
        v_p = jnp.zeros((B, Hp), stream_dtype).at[:, :H].set(
            embeddings.astype(stream_dtype))
        fresh_input = True
    elif stream_dtype != embeddings.dtype:
        v_p = embeddings.astype(stream_dtype)
        fresh_input = True
    else:
        v_p = embeddings                          # pass-through: no HBM copy
        fresh_input = False

    ut_p = jnp.zeros((K, Hp), f32).at[:, :H].set(bias_subspace.T.astype(f32))
    w_f32 = jnp.zeros((Hp, Lp), f32).at[:H, :L].set(cls_w_t.astype(f32))
    utw_p = (ut_p @ w_f32).astype(stream_dtype)   # (K, Lp): U^T @ W fold, once
    w_p = w_f32.astype(stream_dtype)              # matched MXU operand dtype
    b_p = jnp.zeros((1, Lp), f32).at[:, :L].set(cls_b.astype(f32).reshape(1, L))

    # Alias input->debiased output only when the input is a kernel-private
    # copy (or the caller explicitly donates): saves one HBM allocation.
    alias = {0: 0} if (fresh_input or donate_embeddings) else {}

    # Advisory cost estimate (main matmul + rank-K VPU work).
    flops = int(2 * B * Hp * Lp + 6 * B * Hp * K + 2 * B * Lp * K)
    bytes_accessed = int(item * (2 * B * Hp + B * Lp + Hp * Lp + K * Lp)
                         + 4 * (K * Hp + Lp))

    out_shapes = (
        jax.ShapeDtypeStruct((B, Hp), stream_dtype),
        jax.ShapeDtypeStruct((B, Lp), stream_dtype),
    )

    def _run(optimized):
        weight_kw = dict(pipeline_mode=pl.Buffered(1)) if optimized else {}
        call = pl.pallas_call(
            _sentdebias_kernel,
            out_shape=out_shapes,
            grid=grid,
            in_specs=[
                pl.BlockSpec((TB, Hp), lambda i: (i, 0)),               # embeddings tile
                pl.BlockSpec((K, Hp), lambda i: (0, 0), **weight_kw),   # U^T: resident
                pl.BlockSpec((Hp, Lp), lambda i: (0, 0), **weight_kw),  # W: resident
                pl.BlockSpec((K, Lp), lambda i: (0, 0), **weight_kw),   # U^T W: resident
                pl.BlockSpec((1, Lp), lambda i: (0, 0), **weight_kw),   # bias: resident
            ],
            out_specs=(
                pl.BlockSpec((TB, Hp), lambda i: (i, 0)),
                pl.BlockSpec((TB, Lp), lambda i: (i, 0)),
            ),
            input_output_aliases=alias if optimized else {},
            compiler_params=pltpu.CompilerParams(
                dimension_semantics=("parallel",),       # batch axis -> megacore
                vmem_limit_bytes=int(budget),
            ),
            cost_estimate=pl.CostEstimate(
                flops=flops, transcendentals=0, bytes_accessed=bytes_accessed),
        )
        return call(v_p, ut_p, w_p, utw_p, b_p)

    try:
        out_emb_p, out_logits_p = _run(True)
    except Exception:
        # Robust fallback if this jax build rejects pipeline_mode / aliasing.
        out_emb_p, out_logits_p = _run(False)

    out_emb = out_emb_p if Hp == H else out_emb_p[:, :H]
    out_logits = out_logits_p if Lp == L else out_logits_p[:, :L]
    return out_emb, out_logits


# ---------------------------------------------------------------------------
# Glue: synthetic model pieces (deterministic parameter init, plain JAX)
# ---------------------------------------------------------------------------

def get_embedding(input_ids, emb_table):
    """Synthetic _get_embedding: embedding lookup, take token 0 (CLS-style)."""
    return emb_table[input_ids][:, 0, :]          # (B, S, H) -> (B, H)


def compute_bias_subspace(word_pair_ids, emb_table, n_components=1):
    """Synthetic _compute_bias_subspace: PCA on male/female embedding diffs."""
    male_ids, female_ids = word_pair_ids              # each (P, S) int32
    male_emb = get_embedding(male_ids, emb_table)     # (P, H)
    female_emb = get_embedding(female_ids, emb_table) # (P, H)
    diffs = male_emb - female_emb                     # (P, H)
    diffs_c = diffs - jnp.mean(diffs, axis=0, keepdims=True)
    _, _, vt = jnp.linalg.svd(diffs_c, full_matrices=False)
    return vt[:n_components, :].T.astype(jnp.float32) # (H, n_components)


def reference_forward(embeddings, bias_subspace, cls_w_t, cls_b):
    coeff = embeddings @ bias_subspace
    proj = coeff @ bias_subspace.T
    neutral = embeddings - proj
    logits = neutral @ cls_w_t + cls_b
    return neutral, logits


if __name__ == "__main__":
    key = jax.random.PRNGKey(0)
    k_emb, k_ids, k_w, k_b, k_pairs, k_ids2 = jax.random.split(key, 6)

    # Small shapes consistent with the module's forward.
    B, S, H = 2, 8, 32       # batch, seq, hidden
    V = 64                   # synthetic vocab
    N_LABELS = 2
    N_COMPONENTS = 1
    N_PAIRS = 3              # e.g. ('he','she'), ('his','hers'), ('monk','nun')

    # Deterministic parameters.
    emb_table = jax.random.normal(k_emb, (V, H), dtype=jnp.float32)
    cls_w = jax.random.normal(k_w, (N_LABELS, H), dtype=jnp.float32) * 0.1
    cls_b = jax.random.normal(k_b, (N_LABELS,), dtype=jnp.float32) * 0.1
    cls_w_t = cls_w.T                       # (H, L)
    cls_b2d = cls_b.reshape(1, N_LABELS)    # (1, L)

    # Synthetic tokenized word pairs -> bias subspace via PCA (glue).
    male_ids = jax.random.randint(k_pairs, (N_PAIRS, S), 0, V)
    female_ids = (male_ids + 7) % V
    bias_subspace = compute_bias_subspace((male_ids, female_ids), emb_table,
                                          n_components=N_COMPONENTS)  # (H, K)

    # ---- Main forward (small batch, single tile) ---------------------------
    input_ids = jax.random.randint(k_ids, (B, S), 0, V)
    embeddings = get_embedding(input_ids, emb_table)  # (B, H)

    debiased, logits = sentdebias_forward(embeddings, bias_subspace,
                                          cls_w_t, cls_b2d)
    debiased = jax.block_until_ready(debiased)
    logits = jax.block_until_ready(logits)

    ref_deb, ref_logits = reference_forward(embeddings, bias_subspace,
                                            cls_w_t, cls_b2d)
    assert jnp.allclose(debiased, ref_deb, atol=1e-4, rtol=1e-4)
    assert jnp.allclose(logits, ref_logits, atol=1e-4, rtol=1e-4)

    # ---- Multi-tile grid with a partial last block (B=40, TB forced small) -
    input_ids2 = jax.random.randint(k_ids2, (40, S), 0, V)
    embeddings2 = get_embedding(input_ids2, emb_table)
    deb2, log2 = sentdebias_forward(embeddings2, bias_subspace,
                                    cls_w_t, cls_b2d, block_b=16)
    deb2 = jax.block_until_ready(deb2)
    ref_deb2, ref_log2 = reference_forward(embeddings2, bias_subspace,
                                           cls_w_t, cls_b2d)
    assert jnp.allclose(deb2, ref_deb2, atol=1e-4, rtol=1e-4)
    assert jnp.allclose(log2, ref_log2, atol=1e-4, rtol=1e-4)

    # ---- bf16 streaming path (storage/bandwidth only; math stays f32) ------
    deb_bf, log_bf = sentdebias_forward(embeddings, bias_subspace,
                                        cls_w_t, cls_b2d,
                                        stream_dtype=jnp.bfloat16)
    deb_bf = jax.block_until_ready(deb_bf)
    assert jnp.allclose(deb_bf.astype(jnp.float32), ref_deb, atol=5e-2, rtol=5e-2)
    assert jnp.allclose(log_bf.astype(jnp.float32), ref_logits, atol=5e-2, rtol=5e-2)

    # TODO(synk): _loss / _get_loss are abstract in the module; the labels
    # branch (loss computation) is intentionally not implemented.
    print("KERNEL_OK")
</pallas_src>

<mosaic_0001>
module attributes {stable_mosaic.version = 11 : i64} {
  func.func @_sentdebias_kernel(%arg0: i32, %arg1: memref<2x128xf32, #tpu.memory_space<vmem>>, %arg2: memref<1x128xf32, #tpu.memory_space<vmem>>, %arg3: memref<128x128xf32, #tpu.memory_space<vmem>>, %arg4: memref<1x128xf32, #tpu.memory_space<vmem>>, %arg5: memref<1x128xf32, #tpu.memory_space<vmem>>, %arg6: memref<2x128xf32, #tpu.memory_space<vmem>>, %arg7: memref<2x128xf32, #tpu.memory_space<vmem>>) attributes {dimension_semantics = [#tpu.dimension_semantics<parallel>], iteration_bounds = array<i64: 1>, scalar_prefetch = 0 : i64, scratch_operands = 0 : i64, tpu.core_type = #tpu.core_type<tc>, window_params = [{transform_indices = @transform_0, window_bounds = array<i64: 2, 128>}, {pipeline_mode = #tpu.pipeline_mode<synchronous>, transform_indices = @transform_1, window_bounds = array<i64: 1, 128>}, {pipeline_mode = #tpu.pipeline_mode<synchronous>, transform_indices = @transform_2, window_bounds = array<i64: 128, 128>}, {pipeline_mode = #tpu.pipeline_mode<synchronous>, transform_indices = @transform_3, window_bounds = array<i64: 1, 128>}, {pipeline_mode = #tpu.pipeline_mode<synchronous>, transform_indices = @transform_4, window_bounds = array<i64: 1, 128>}, {transform_indices = @transform_5, window_bounds = array<i64: 2, 128>}, {transform_indices = @transform_6, window_bounds = array<i64: 2, 128>}]} {
    %c0 = arith.constant 0 : index
    %c0_0 = arith.constant 0 : index
    %0 = vector.load %arg1[%c0, %c0_0] : memref<2x128xf32, #tpu.memory_space<vmem>>, vector<2x128xf32>
    %c0_1 = arith.constant 0 : index
    %c0_2 = arith.constant 0 : index
    %1 = vector.load %arg3[%c0_1, %c0_2] : memref<128x128xf32, #tpu.memory_space<vmem>>, vector<128x128xf32>
    %cst = arith.constant dense<0.000000e+00> : vector<2x128xf32>
    %2 = tpu.matmul %0, %1, %cst {dimension_numbers = #tpu.dot_dimension_numbers<[1], [0], [0], [1], [0, 0, 1, 1], [], []>} : vector<2x128xf32>, vector<128x128xf32>, vector<2x128xf32> -> vector<2x128xf32>
    %c0_3 = arith.constant 0 : index
    %c0_4 = arith.constant 0 : index
    %3 = vector.load %arg2[%c0_3, %c0_4] : memref<1x128xf32, #tpu.memory_space<vmem>>, vector<1x128xf32>
    %c0_5 = arith.constant 0 : index
    %c0_6 = arith.constant 0 : index
    %4 = vector.load %arg4[%c0_5, %c0_6] : memref<1x128xf32, #tpu.memory_space<vmem>>, vector<1x128xf32>
    %cst_7 = arith.constant 0.000000e+00 : f32
    %5 = vector.broadcast %cst_7 : f32 to vector<2x128xf32>
    %6 = vector.broadcast %3 : vector<1x128xf32> to vector<2x128xf32>
    %7 = arith.mulf %0, %6 : vector<2x128xf32>
    %cst_8 = arith.constant dense<0.000000e+00> : vector<2xf32>
    %8 = vector.multi_reduction <add>, %7, %cst_8 [1] : vector<2x128xf32> to vector<2xf32>
    %9 = vector.shape_cast %8 : vector<2xf32> to vector<2x1xf32>
    %10 = vector.broadcast %9 : vector<2x1xf32> to vector<2x128xf32>
    %11 = vector.broadcast %3 : vector<1x128xf32> to vector<2x128xf32>
    %12 = arith.mulf %10, %11 : vector<2x128xf32>
    %13 = arith.addf %5, %12 : vector<2x128xf32>
    %14 = vector.broadcast %9 : vector<2x1xf32> to vector<2x128xf32>
    %15 = vector.broadcast %4 : vector<1x128xf32> to vector<2x128xf32>
    %16 = arith.mulf %14, %15 : vector<2x128xf32>
    %17 = arith.subf %2, %16 : vector<2x128xf32>
    %18 = arith.subf %0, %13 : vector<2x128xf32>
    %c0_9 = arith.constant 0 : index
    %c0_10 = arith.constant 0 : index
    %19 = vector.load %arg6[%c0_9, %c0_10] : memref<2x128xf32, #tpu.memory_space<vmem>>, vector<2x128xf32>
    tpu.vector_store %arg6[%c0_9, %c0_10], %18 {strides = array<i32>} : memref<2x128xf32, #tpu.memory_space<vmem>>, vector<2x128xf32>,
    %c0_11 = arith.constant 0 : index
    %c0_12 = arith.constant 0 : index
    %20 = vector.load %arg5[%c0_11, %c0_12] : memref<1x128xf32, #tpu.memory_space<vmem>>, vector<1x128xf32>
    %21 = vector.broadcast %20 : vector<1x128xf32> to vector<2x128xf32>
    %22 = arith.addf %17, %21 : vector<2x128xf32>
    %c0_13 = arith.constant 0 : index
    %c0_14 = arith.constant 0 : index
    %23 = vector.load %arg7[%c0_13, %c0_14] : memref<2x128xf32, #tpu.memory_space<vmem>>, vector<2x128xf32>
    tpu.vector_store %arg7[%c0_13, %c0_14], %22 {strides = array<i32>} : memref<2x128xf32, #tpu.memory_space<vmem>>, vector<2x128xf32>,
    return
  }
  func.func @transform_0(%arg0: i32) -> (i32, i32) {
    %c0_i32 = arith.constant 0 : i32
    %c0_i32_0 = arith.constant 0 : i32
    return %arg0, %c0_i32 : i32, i32
  }
  func.func @transform_1(%arg0: i32) -> (i32, i32) {
    %c0_i32 = arith.constant 0 : i32
    %c0_i32_0 = arith.constant 0 : i32
    %c0_i32_1 = arith.constant 0 : i32
    return %c0_i32, %c0_i32_0 : i32, i32
  }
  func.func @transform_2(%arg0: i32) -> (i32, i32) {
    %c0_i32 = arith.constant 0 : i32
    %c0_i32_0 = arith.constant 0 : i32
    %c0_i32_1 = arith.constant 0 : i32
    return %c0_i32, %c0_i32_0 : i32, i32
  }
  func.func @transform_3(%arg0: i32) -> (i32, i32) {
    %c0_i32 = arith.constant 0 : i32
    %c0_i32_0 = arith.constant 0 : i32
    %c0_i32_1 = arith.constant 0 : i32
    return %c0_i32, %c0_i32_0 : i32, i32
  }
  func.func @transform_4(%arg0: i32) -> (i32, i32) {
    %c0_i32 = arith.constant 0 : i32
    %c0_i32_0 = arith.constant 0 : i32
    %c0_i32_1 = arith.constant 0 : i32
    return %c0_i32, %c0_i32_0 : i32, i32
  }
  func.func @transform_5(%arg0: i32) -> (i32, i32) {
    %c0_i32 = arith.constant 0 : i32
    %c0_i32_0 = arith.constant 0 : i32
    return %arg0, %c0_i32 : i32, i32
  }
  func.func @transform_6(%arg0: i32) -> (i32, i32) {
    %c0_i32 = arith.constant 0 : i32
    %c0_i32_0 = arith.constant 0 : i32
    return %arg0, %c0_i32 : i32, i32
  }
}

module attributes {stable_mosaic.version = 11 : i64} {
  func.func @_sentdebias_kernel(%arg0: i32, %arg1: memref<2x128xf32, #tpu.memory_space<vmem>>, %arg2: memref<1x128xf32, #tpu.memory_space<vmem>>, %arg3: memref<128x128xf32, #tpu.memory_space<vmem>>, %arg4: memref<1x128xf32, #tpu.memory_space<vmem>>, %arg5: memref<1x128xf32, #tpu.memory_space<vmem>>, %arg6: memref<2x128xf32, #tpu.memory_space<vmem>>, %arg7: memref<2x128xf32, #tpu.memory_space<vmem>>) attributes {dimension_semantics = [#tpu.dimension_semantics<parallel>], iteration_bounds = array<i64: 1>, scalar_prefetch = 0 : i64, scratch_operands = 0 : i64, tpu.core_type = #tpu.core_type<tc>, window_params = [{transform_indices = @transform_0, window_bounds = array<i64: 2, 128>}, {pipeline_mode = #tpu.pipeline_mode<synchronous>, transform_indices = @transform_1, window_bounds = array<i64: 1, 128>}, {pipeline_mode = #tpu.pipeline_mode<synchronous>, transform_indices = @transform_2, window_bounds = array<i64: 128, 128>}, {pipeline_mode = #tpu.pipeline_mode<synchronous>, transform_indices = @transform_3, window_bounds = array<i64: 1, 128>}, {pipeline_mode = #tpu.pipeline_mode<synchronous>, transform_indices = @transform_4, window_bounds = array<i64: 1, 128>}, {transform_indices = @transform_5, window_bounds = array<i64: 2, 128>}, {transform_indices = @transform_6, window_bounds = array<i64: 2, 128>}]} {
    %c0 = arith.constant 0 : index
    %c0_0 = arith.constant 0 : index
    %0 = vector.load %arg1[%c0, %c0_0] : memref<2x128xf32, #tpu.memory_space<vmem>>, vector<2x128xf32>
    %c0_1 = arith.constant 0 : index
    %c0_2 = arith.constant 0 : index
    %1 = vector.load %arg3[%c0_1, %c0_2] : memref<128x128xf32, #tpu.memory_space<vmem>>, vector<128x128xf32>
    %cst = arith.constant dense<0.000000e+00> : vector<2x128xf32>
    %2 = tpu.matmul %0, %1, %cst {dimension_numbers = #tpu.dot_dimension_numbers<[1], [0], [0], [1], [0, 0, 1, 1], [], []>} : vector<2x128xf32>, vector<128x128xf32>, vector<2x128xf32> -> vector<2x128xf32>
    %c0_3 = arith.constant 0 : index
    %c0_4 = arith.constant 0 : index
    %3 = vector.load %arg2[%c0_3, %c0_4] : memref<1x128xf32, #tpu.memory_space<vmem>>, vector<1x128xf32>
    %c0_5 = arith.constant 0 : index
    %c0_6 = arith.constant 0 : index
    %4 = vector.load %arg4[%c0_5, %c0_6] : memref<1x128xf32, #tpu.memory_space<vmem>>, vector<1x128xf32>
    %cst_7 = arith.constant 0.000000e+00 : f32
    %5 = vector.broadcast %cst_7 : f32 to vector<2x128xf32>
    %6 = vector.broadcast %3 : vector<1x128xf32> to vector<2x128xf32>
    %7 = arith.mulf %0, %6 : vector<2x128xf32>
    %cst_8 = arith.constant dense<0.000000e+00> : vector<2xf32>
    %8 = vector.multi_reduction <add>, %7, %cst_8 [1] : vector<2x128xf32> to vector<2xf32>
    %9 = vector.shape_cast %8 : vector<2xf32> to vector<2x1xf32>
    %10 = vector.broadcast %9 : vector<2x1xf32> to vector<2x128xf32>
    %11 = vector.broadcast %3 : vector<1x128xf32> to vector<2x128xf32>
    %12 = arith.mulf %10, %11 : vector<2x128xf32>
    %13 = arith.addf %5, %12 : vector<2x128xf32>
    %14 = vector.broadcast %9 : vector<2x1xf32> to vector<2x128xf32>
    %15 = vector.broadcast %4 : vector<1x128xf32> to vector<2x128xf32>
    %16 = arith.mulf %14, %15 : vector<2x128xf32>
    %17 = arith.subf %2, %16 : vector<2x128xf32>
    %18 = arith.subf %0, %13 : vector<2x128xf32>
    %c0_9 = arith.constant 0 : index
    %c0_10 = arith.constant 0 : index
    %19 = vector.load %arg6[%c0_9, %c0_10] : memref<2x128xf32, #tpu.memory_space<vmem>>, vector<2x128xf32>
    tpu.vector_store %arg6[%c0_9, %c0_10], %18 {strides = array<i32>} : memref<2x128xf32, #tpu.memory_space<vmem>>, vector<2x128xf32>,
    %c0_11 = arith.constant 0 : index
    %c0_12 = arith.constant 0 : index
    %20 = vector.load %arg5[%c0_11, %c0_12] : memref<1x128xf32, #tpu.memory_space<vmem>>, vector<1x128xf32>
    %21 = vector.broadcast %20 : vector<1x128xf32> to vector<2x128xf32>
    %22 = arith.addf %17, %21 : vector<2x128xf32>
    %c0_13 = arith.constant 0 : index
    %c0_14 = arith.constant 0 : index
    %23 = vector.load %arg7[%c0_13, %c0_14] : memref<2x128xf32, #tpu.memory_space<vmem>>, vector<2x128xf32>
    tpu.vector_store %arg7[%c0_13, %c0_14], %22 {strides = array<i32>} : memref<2x128xf32, #tpu.memory_space<vmem>>, vector<2x128xf32>,
    return
  }
  func.func @transform_0(%arg0: i32) -> (i32, i32) {
    %c0_i32 = arith.constant 0 : i32
    %c0_i32_0 = arith.constant 0 : i32
    return %arg0, %c0_i32 : i32, i32
  }
  func.func @transform_1(%arg0: i32) -> (i32, i32) {
    %c0_i32 = arith.constant 0 : i32
    %c0_i32_0 = arith.constant 0 : i32
    %c0_i32_1 = arith.constant 0 : i32
    return %c0_i32, %c0_i32_0 : i32, i32
  }
  func.func @transform_2(%arg0: i32) -> (i32, i32) {
    %c0_i32 = arith.constant 0 : i32
    %c0_i32_0 = arith.constant 0 : i32
    %c0_i32_1 = arith.constant 0 : i32
    return %c0_i32, %c0_i32_0 : i32, i32
  }
  func.func @transform_3(%arg0: i32) -> (i32, i32) {
    %c0_i32 = arith.constant 0 : i32
    %c0_i32_0 = arith.constant 0 : i32
    %c0_i32_1 = arith.constant 0 : i32
    return %c0_i32, %c0_i32_0 : i32, i32
  }
  func.func @transform_4(%arg0: i32) -> (i32, i32) {
    %c0_i32 = arith.constant 0 : i32
    %c0_i32_0 = arith.constant 0 : i32
    %c0_i32_1 = arith.constant 0 : i32
    return %c0_i32, %c0_i32_0 : i32, i32
  }
  func.func @transform_5(%arg0: i32) -> (i32, i32) {
    %c0_i32 = arith.constant 0 : i32
    %c0_i32_0 = arith.constant 0 : i32
    return %arg0, %c0_i32 : i32, i32
  }
  func.func @transform_6(%arg0: i32) -> (i32, i32) {
    %c0_i32 = arith.constant 0 : i32
    %c0_i32_0 = arith.constant 0 : i32
    return %arg0, %c0_i32 : i32, i32
  }
}

</mosaic_0001>

<llo_original>
// kernel: tpu_custom_call.1
$region0: #{tpu_custom_call.1}
  #allocation0 [shape = 'u32[]', space=smem, size = 0x4, offset = 0x4, fixed_abs, tag = 'smem constant byte address 0x4 - core index']
  #allocation1 [shape = 'u32[144,128]{1,0:T(1,128)}', space=vmem, size = 0x12000, scoped, tag = 'internal scratch']
  %s0 = inlined_call_operand.hbm [shape: f32[2,128], index: 0, kind: input, shape index: {}, may-alias: {0,5}]
  %s1 = inlined_call_operand.vmem [shape: f32[1,128], index: 1, kind: input, shape index: {}]
  %s2 = inlined_call_operand.hbm [shape: f32[128,128], index: 2, kind: input, shape index: {}]
  %s3 = inlined_call_operand.vmem [shape: f32[1,128], index: 3, kind: input, shape index: {}]
  %s4 = inlined_call_operand.vmem [shape: f32[1,128], index: 4, kind: input, shape index: {}]
  %s5 = inlined_call_operand.hbm [shape: f32[2,128], index: 5, kind: output, shape index: {0}, may-alias: {0,5}]
  %s6 = inlined_call_operand.hbm [shape: f32[2,128], index: 6, kind: output, shape index: {1}]
  %7 = xla_tuple %s5, %s6
  %s8 = sld [smem:[#allocation0]]
  $region46: #{tpu_custom_call.1} parent=0
    _
  %s10 = ssub.s32 1, %s8
  %s11 = scalar_select 0, %s10, %s8
  $region1: #{tpu_custom_call.1} parent=0
    #allocation2 [shape = 'u8[1024]{0}', space=vmem, size = 0x400, scoped, tag = 'input window, operand 0, single buffered']
    #allocation3 [shape = 's32[1]{0}', space=sflag, size = 0x4, scoped, tag = 'scoped memory for tpu_custom_call.1']
    #allocation4 [shape = 's32[1]{0}', space=sflag, size = 0x4, scoped, tag = 'scoped memory for tpu_custom_call.1']
    #allocation5 [shape = 'u8[65536]{0}', space=vmem, size = 0x10000, scoped, tag = 'input window, operand 2, single buffered']
    #allocation6 [shape = 's32[1]{0}', space=sflag, size = 0x4, scoped, tag = 'scoped memory for tpu_custom_call.1']
    #allocation7 [shape = 'u8[1024]{0}', space=vmem, size = 0x400, scoped, tag = 'output window, operand 0, single buffered']
    #allocation8 [shape = 'u8[1024]{0}', space=vmem, size = 0x400, scoped, tag = 'output window, operand 1, single buffered']
    #allocation9 [shape = 's32[1]{0}', space=sflag, size = 0x4, scoped, tag = 'scoped memory for tpu_custom_call.1']
    %12 = vsyncpa [#allocation3], 0
    %13 = vsyncpa [#allocation6], 0
    %14 = vsyncpa [#allocation4], 0
    %15 = vsyncpa [#allocation9], 0
    // Predicated region
    $region2: #{tpu_custom_call.1} parent=1 // pred_check
      _
    $region3: #{tpu_custom_call.1} parent=1 // pred_check_branch
      %17 = sbr.rel (0) target = $region5
    $region4: #{tpu_custom_call.1} parent=1 // pred_region
      %s19 = ssub.s32 32, 32
      %20 = vsyncadd [#allocation3], %s19
      %s22 = sshll.u32 [#allocation2], 4
      %s23 = int_to_ptr.vmem [resolvable:$true] %s22
      %25 = dma.hbm_to_vmem [thread:$0]  %s0, 32, %s23, [#allocation3]
    $region5: #{tpu_custom_call.1} parent=1 // pred_fallthru
      _
    // Predicated region
    $region6: #{tpu_custom_call.1} parent=1 // pred_check
      _
    $region7: #{tpu_custom_call.1} parent=1 // pred_check_branch
      %27 = sbr.rel (0) target = $region9
    $region8: #{tpu_custom_call.1} parent=1 // pred_region
      _
    $region9: #{tpu_custom_call.1} parent=1 // pred_fallthru
      _
    // Predicated region
    $region10: #{tpu_custom_call.1} parent=1 // pred_check
      _
    $region11: #{tpu_custom_call.1} parent=1 // pred_check_branch
      %29 = sbr.rel (0) target = $region13
    $region12: #{tpu_custom_call.1} parent=1 // pred_region
      %s31 = ssub.s32 2048, 2048
      %32 = vsyncadd [#allocation6], %s31
      %s33 = sshll.u32 [#allocation5], 4
      %s34 = int_to_ptr.vmem [resolvable:$true] %s33
      %39 = dma.hbm_to_vmem [thread:$0]  %s2, 2048, %s34, [#allocation6], 128, 128, 8
    $region13: #{tpu_custom_call.1} parent=1 // pred_fallthru
      _
    // Predicated region
    $region14: #{tpu_custom_call.1} parent=1 // pred_check
      _
    $region15: #{tpu_custom_call.1} parent=1 // pred_check_branch
      %41 = sbr.rel (0) target = $region17
    $region16: #{tpu_custom_call.1} parent=1 // pred_region
      _
    $region17: #{tpu_custom_call.1} parent=1 // pred_fallthru
      _
    // Predicated region
    $region18: #{tpu_custom_call.1} parent=1 // pred_check
      _
    $region19: #{tpu_custom_call.1} parent=1 // pred_check_branch
      %43 = sbr.rel (0) target = $region21
    $region20: #{tpu_custom_call.1} parent=1 // pred_region
      _
    $region21: #{tpu_custom_call.1} parent=1 // pred_fallthru
      _
    // Predicated region
    $region22: #{tpu_custom_call.1} parent=1 // pred_check
      _
    $region23: #{tpu_custom_call.1} parent=1 // pred_check_branch
      %45 = sbr.rel (0) target = $region25
    $region24: #{tpu_custom_call.1} parent=1 // pred_region
      %46 = dma.done [#allocation3], 32
    $region25: #{tpu_custom_call.1} parent=1 // pred_fallthru
      _
    // Predicated region
    $region26: #{tpu_custom_call.1} parent=1 // pred_check
      _
    $region27: #{tpu_custom_call.1} parent=1 // pred_check_branch
      %48 = sbr.rel (0) target = $region29
    $region28: #{tpu_custom_call.1} parent=1 // pred_region
      %49 = dma.done [#allocation6], 2048
    $region29: #{tpu_custom_call.1} parent=1 // pred_fallthru
      _
    %v50 = vld [vmem:[#allocation2] sm:$0x3]
    %v51 = vld [vmem:[#allocation5] sm:$0xff]
    %v52 = vld [vmem:[#allocation5 + $0x8] sm:$0xff]
    %v53 = vld [vmem:[#allocation5 + $0x10] sm:$0xff]
    %v54 = vld [vmem:[#allocation5 + $0x18] sm:$0xff]
    %v55 = vld [vmem:[#allocation5 + $0x20] sm:$0xff]
    %v56 = vld [vmem:[#allocation5 + $0x28] sm:$0xff]
    %v57 = vld [vmem:[#allocation5 + $0x30] sm:$0xff]
    %v58 = vld [vmem:[#allocation5 + $0x38] sm:$0xff]
    %v59 = vld [vmem:[#allocation5 + $0x40] sm:$0xff]
    %v60 = vld [vmem:[#allocation5 + $0x48] sm:$0xff]
    %v61 = vld [vmem:[#allocation5 + $0x50] sm:$0xff]
    %v62 = vld [vmem:[#allocation5 + $0x58] sm:$0xff]
    %v63 = vld [vmem:[#allocation5 + $0x60] sm:$0xff]
    %v64 = vld [vmem:[#allocation5 + $0x68] sm:$0xff]
    %v65 = vld [vmem:[#allocation5 + $0x70] sm:$0xff]
    %v66 = vld [vmem:[#allocation5 + $0x78] sm:$0xff]
    %67 = vmatprep.subr.mxu0 0.0
    %68 = vmatpush1.msra.mxu0 %v66
    %69 = vmatprep.subr.mxu0 0.0
    %70 = vmatpush1.msra.mxu0 %v65
    %71 = vmatprep.subr.mxu0 0.0
    %72 = vmatpush1.msra.mxu0 %v64
    %73 = vmatprep.subr.mxu0 0.0
    %74 = vmatpush1.msra.mxu0 %v63
    %75 = vmatprep.subr.mxu0 0.0
    %76 = vmatpush1.msra.mxu0 %v62
    %77 = vmatprep.subr.mxu0 0.0
    %78 = vmatpush1.msra.mxu0 %v61
    %79 = vmatprep.subr.mxu0 0.0
    %80 = vmatpush1.msra.mxu0 %v60
    %81 = vmatprep.subr.mxu0 0.0
    %82 = vmatpush1.msra.mxu0 %v59
    %83 = vmatprep.subr.mxu0 0.0
    %84 = vmatpush1.msra.mxu0 %v58
    %85 = vmatprep.subr.mxu0 0.0
    %86 = vmatpush1.msra.mxu0 %v57
    %87 = vmatprep.subr.mxu0 0.0
    %88 = vmatpush1.msra.mxu0 %v56
    %89 = vmatprep.subr.mxu0 0.0
    %90 = vmatpush1.msra.mxu0 %v55
    %91 = vmatprep.subr.mxu0 0.0
    %92 = vmatpush1.msra.mxu0 %v54
    %93 = vmatprep.subr.mxu0 0.0
    %94 = vmatpush1.msra.mxu0 %v53
    %95 = vmatprep.subr.mxu0 0.0
    %96 = vmatpush1.msra.mxu0 %v52
    %97 = vmatprep.subr.mxu0 0.0
    %98 = vmatpush1.msra.mxu0 %v51
    %99 = vmatprep.subr.mxu0 0.0
    %100 = vmatpush2.msra.mxu0 0.0
    %101 = vmatprep.subr.mxu0 0.0
    %102 = vmatpush2.msra.mxu0 0.0
    %103 = vmatprep.subr.mxu0 0.0
    %104 = vmatpush2.msra.mxu0 0.0
    %105 = vmatprep.subr.mxu0 0.0
    %106 = vmatpush2.msra.mxu0 0.0
    %107 = vmatprep.subr.mxu0 0.0
    %108 = vmatpush2.msra.mxu0 0.0
    %109 = vmatprep.subr.mxu0 0.0
    %110 = vmatpush2.msra.mxu0 0.0
    %111 = vmatprep.subr.mxu0 0.0
    %112 = vmatpush2.msra.mxu0 0.0
    %113 = vmatprep.subr.mxu0 0.0
    %114 = vmatpush2.msra.mxu0 0.0
    %115 = vmatprep.subr.mxu0 0.0
    %116 = vmatpush2.msra.mxu0 0.0
    %117 = vmatprep.subr.mxu0 0.0
    %118 = vmatpush2.msra.mxu0 0.0
    %119 = vmatprep.subr.mxu0 0.0
    %120 = vmatpush2.msra.mxu0 0.0
    %121 = vmatprep.subr.mxu0 0.0
    %122 = vmatpush2.msra.mxu0 0.0
    %123 = vmatprep.subr.mxu0 0.0
    %124 = vmatpush2.msra.mxu0 0.0
    %125 = vmatprep.subr.mxu0 0.0
    %126 = vmatpush2.msra.mxu0 0.0
    %127 = vmatprep.subr.mxu0 0.0
    %128 = vmatpush2.msra.mxu0 0.0
    %129 = vmatprep.subr.mxu0 0.0
    %130 = vmatpush2.msra.mxu0 0.0
    %131 = vmatprep.mubr.f32.mxu0 0.0
    %132 = vmatmul.mubr.f32.gmra.mxu0 %v50
    %v133 = vpop.f32.mrf.mxu0
    %v134 = vadd.f32 0.0, %v133
    %v135 = vpop.f32.mrf.mxu0
    %136 = vdwg.mxu0
    %v137 = vld [vmem:[%s1] sm:$0x1]
    %v138 = vld [vmem:[%s3] sm:$0x1]
    %v140 = vlaneseq
    %v141 = vshrl.u32 %v140, 7
    %v142 = vsub.s32 0, %v141
    %v143 = vrot.slane %v137, %v142
    %v145 = vmul.f32 %v50, %v143
    %vm146 = vcmask 1041408
    %v147 = vsel %vm146, %v145, 0.0
    %148 = vadd.xlane.f32.xlu0 %v147
    %v149 = vpop.xlane.xlu0 %148
    %v150 = vmul.f32 %v149, %v143
    %v151 = vadd.f32 %v150, 0.0
    %v153 = vlaneseq
    %v154 = vshrl.u32 %v153, 7
    %v155 = vsub.s32 0, %v154
    %v156 = vrot.slane %v138, %v155
    %v158 = vmul.f32 %v149, %v156
    %v159 = vsub.f32 %v134, %v158
    %v160 = vsub.f32 %v50, %v151
    %161 = vst [vmem:[#allocation7] sm:$0x3] %v160
    %v162 = vld [vmem:[%s4] sm:$0x1]
    %v164 = vlaneseq
    %v165 = vshrl.u32 %v164, 7
    %v166 = vsub.s32 0, %v165
    %v167 = vrot.slane %v162, %v166
    %v169 = vadd.f32 %v159, %v167
    %170 = vst [vmem:[#allocation8] sm:$0x3] %v169
    // Predicated region
    $region30: #{tpu_custom_call.1} parent=1 // pred_check
      _
    $region31: #{tpu_custom_call.1} parent=1 // pred_check_branch
      %172 = sbr.rel (0) target = $region33
    $region32: #{tpu_custom_call.1} parent=1 // pred_region
      %s174 = ssub.s32 32, 32
      %175 = vsyncadd [#allocation4], %s174
      %s177 = sshll.u32 [#allocation7], 4
      %s178 = int_to_ptr.vmem [resolvable:$true] %s177
      %180 = dma.vmem_to_hbm [thread:$0]  %s178, 32, %s5, [#allocation4]
    $region33: #{tpu_custom_call.1} parent=1 // pred_fallthru
      _
    // Predicated region
    $region34: #{tpu_custom_call.1} parent=1 // pred_check
      _
    $region35: #{tpu_custom_call.1} parent=1 // pred_check_branch
      %182 = sbr.rel (0) target = $region37
    $region36: #{tpu_custom_call.1} parent=1 // pred_region
      %s184 = ssub.s32 32, 32
      %185 = vsyncadd [#allocation9], %s184
      %s187 = sshll.u32 [#allocation8], 4
      %s188 = int_to_ptr.vmem [resolvable:$true] %s187
      %190 = dma.vmem_to_hbm [thread:$0]  %s188, 32, %s6, [#allocation9]
    $region37: #{tpu_custom_call.1} parent=1 // pred_fallthru
      _
    // Predicated region
    $region38: #{tpu_custom_call.1} parent=1 // pred_check
      _
    $region39: #{tpu_custom_call.1} parent=1 // pred_check_branch
      %192 = sbr.rel (0) target = $region41
    $region40: #{tpu_custom_call.1} parent=1 // pred_region
      %193 = dma.done [#allocation4], 32
    $region41: #{tpu_custom_call.1} parent=1 // pred_fallthru
      _
    // Predicated region
    $region42: #{tpu_custom_call.1} parent=1 // pred_check
      _
    $region43: #{tpu_custom_call.1} parent=1 // pred_check_branch
      %195 = sbr.rel (0) target = $region45
    $region44: #{tpu_custom_call.1} parent=1 // pred_region
      %196 = dma.done [#allocation9], 32
    $region45: #{tpu_custom_call.1} parent=1 // pred_fallthru
      _
    %197 = vsyncpa [#allocation3], 1
    %198 = vsyncpa [#allocation6], 1
    %199 = vsyncpa [#allocation4], 1
    %200 = vsyncpa [#allocation9], 1

// kernel: tpu_custom_call.1
$region0: #{tpu_custom_call.1}
  #allocation0 [shape = 'u32[]', space=smem, size = 0x4, offset = 0x4, fixed_abs, tag = 'smem constant byte address 0x4 - core index']
  #allocation1 [shape = 'u32[144,128]{1,0:T(1,128)}', space=vmem, size = 0x12000, scoped, tag = 'internal scratch']
  %s0 = inlined_call_operand.hbm [shape: f32[2,128], index: 0, kind: input, shape index: {}]
  %s1 = inlined_call_operand.vmem [shape: f32[1,128], index: 1, kind: input, shape index: {}]
  %s2 = inlined_call_operand.hbm [shape: f32[128,128], index: 2, kind: input, shape index: {}]
  %s3 = inlined_call_operand.vmem [shape: f32[1,128], index: 3, kind: input, shape index: {}]
  %s4 = inlined_call_operand.vmem [shape: f32[1,128], index: 4, kind: input, shape index: {}]
  %s5 = inlined_call_operand.hbm [shape: f32[2,128], index: 5, kind: output, shape index: {0}]
  %s6 = inlined_call_operand.hbm [shape: f32[2,128], index: 6, kind: output, shape index: {1}]
  %7 = xla_tuple %s5, %s6
  %s8 = sld [smem:[#allocation0]]
  $region46: #{tpu_custom_call.1} parent=0
    _
  %s10 = ssub.s32 1, %s8
  %s11 = scalar_select 0, %s10, %s8
  $region1: #{tpu_custom_call.1} parent=0
    #allocation2 [shape = 'u8[1024]{0}', space=vmem, size = 0x400, scoped, tag = 'input window, operand 0, single buffered']
    #allocation3 [shape = 's32[1]{0}', space=sflag, size = 0x4, scoped, tag = 'scoped memory for tpu_custom_call.1']
    #allocation4 [shape = 's32[1]{0}', space=sflag, size = 0x4, scoped, tag = 'scoped memory for tpu_custom_call.1']
    #allocation5 [shape = 'u8[65536]{0}', space=vmem, size = 0x10000, scoped, tag = 'input window, operand 2, single buffered']
    #allocation6 [shape = 's32[1]{0}', space=sflag, size = 0x4, scoped, tag = 'scoped memory for tpu_custom_call.1']
    #allocation7 [shape = 'u8[1024]{0}', space=vmem, size = 0x400, scoped, tag = 'output window, operand 0, single buffered']
    #allocation8 [shape = 'u8[1024]{0}', space=vmem, size = 0x400, scoped, tag = 'output window, operand 1, single buffered']
    #allocation9 [shape = 's32[1]{0}', space=sflag, size = 0x4, scoped, tag = 'scoped memory for tpu_custom_call.1']
    %12 = vsyncpa [#allocation3], 0
    %13 = vsyncpa [#allocation6], 0
    %14 = vsyncpa [#allocation4], 0
    %15 = vsyncpa [#allocation9], 0
    // Predicated region
    $region2: #{tpu_custom_call.1} parent=1 // pred_check
      _
    $region3: #{tpu_custom_call.1} parent=1 // pred_check_branch
      %17 = sbr.rel (0) target = $region5
    $region4: #{tpu_custom_call.1} parent=1 // pred_region
      %s19 = ssub.s32 32, 32
      %20 = vsyncadd [#allocation3], %s19
      %s22 = sshll.u32 [#allocation2], 4
      %s23 = int_to_ptr.vmem [resolvable:$true] %s22
      %25 = dma.hbm_to_vmem [thread:$0]  %s0, 32, %s23, [#allocation3]
    $region5: #{tpu_custom_call.1} parent=1 // pred_fallthru
      _
    // Predicated region
    $region6: #{tpu_custom_call.1} parent=1 // pred_check
      _
    $region7: #{tpu_custom_call.1} parent=1 // pred_check_branch
      %27 = sbr.rel (0) target = $region9
    $region8: #{tpu_custom_call.1} parent=1 // pred_region
      _
    $region9: #{tpu_custom_call.1} parent=1 // pred_fallthru
      _
    // Predicated region
    $region10: #{tpu_custom_call.1} parent=1 // pred_check
      _
    $region11: #{tpu_custom_call.1} parent=1 // pred_check_branch
      %29 = sbr.rel (0) target = $region13
    $region12: #{tpu_custom_call.1} parent=1 // pred_region
      %s31 = ssub.s32 2048, 2048
      %32 = vsyncadd [#allocation6], %s31
      %s33 = sshll.u32 [#allocation5], 4
      %s34 = int_to_ptr.vmem [resolvable:$true] %s33
      %39 = dma.hbm_to_vmem [thread:$0]  %s2, 2048, %s34, [#allocation6], 128, 128, 8
    $region13: #{tpu_custom_call.1} parent=1 // pred_fallthru
      _
    // Predicated region
    $region14: #{tpu_custom_call.1} parent=1 // pred_check
      _
    $region15: #{tpu_custom_call.1} parent=1 // pred_check_branch
      %41 = sbr.rel (0) target = $region17
    $region16: #{tpu_custom_call.1} parent=1 // pred_region
      _
    $region17: #{tpu_custom_call.1} parent=1 // pred_fallthru
      _
    // Predicated region
    $region18: #{tpu_custom_call.1} parent=1 // pred_check
      _
    $region19: #{tpu_custom_call.1} parent=1 // pred_check_branch
      %43 = sbr.rel (0) target = $region21
    $region20: #{tpu_custom_call.1} parent=1 // pred_region
      _
    $region21: #{tpu_custom_call.1} parent=1 // pred_fallthru
      _
    // Predicated region
    $region22: #{tpu_custom_call.1} parent=1 // pred_check
      _
    $region23: #{tpu_custom_call.1} parent=1 // pred_check_branch
      %45 = sbr.rel (0) target = $region25
    $region24: #{tpu_custom_call.1} parent=1 // pred_region
      %46 = dma.done [#allocation3], 32
    $region25: #{tpu_custom_call.1} parent=1 // pred_fallthru
      _
    // Predicated region
    $region26: #{tpu_custom_call.1} parent=1 // pred_check
      _
    $region27: #{tpu_custom_call.1} parent=1 // pred_check_branch
      %48 = sbr.rel (0) target = $region29
    $region28: #{tpu_custom_call.1} parent=1 // pred_region
      %49 = dma.done [#allocation6], 2048
    $region29: #{tpu_custom_call.1} parent=1 // pred_fallthru
      _
    %v50 = vld [vmem:[#allocation2] sm:$0x3]
    %v51 = vld [vmem:[#allocation5] sm:$0xff]
    %v52 = vld [vmem:[#allocation5 + $0x8] sm:$0xff]
    %v53 = vld [vmem:[#allocation5 + $0x10] sm:$0xff]
    %v54 = vld [vmem:[#allocation5 + $0x18] sm:$0xff]
    %v55 = vld [vmem:[#allocation5 + $0x20] sm:$0xff]
    %v56 = vld [vmem:[#allocation5 + $0x28] sm:$0xff]
    %v57 = vld [vmem:[#allocation5 + $0x30] sm:$0xff]
    %v58 = vld [vmem:[#allocation5 + $0x38] sm:$0xff]
    %v59 = vld [vmem:[#allocation5 + $0x40] sm:$0xff]
    %v60 = vld [vmem:[#allocation5 + $0x48] sm:$0xff]
    %v61 = vld [vmem:[#allocation5 + $0x50] sm:$0xff]
    %v62 = vld [vmem:[#allocation5 + $0x58] sm:$0xff]
    %v63 = vld [vmem:[#allocation5 + $0x60] sm:$0xff]
    %v64 = vld [vmem:[#allocation5 + $0x68] sm:$0xff]
    %v65 = vld [vmem:[#allocation5 + $0x70] sm:$0xff]
    %v66 = vld [vmem:[#allocation5 + $0x78] sm:$0xff]
    %67 = vmatprep.subr.mxu0 0.0
    %68 = vmatpush1.msra.mxu0 %v66
    %69 = vmatprep.subr.mxu0 0.0
    %70 = vmatpush1.msra.mxu0 %v65
    %71 = vmatprep.subr.mxu0 0.0
    %72 = vmatpush1.msra.mxu0 %v64
    %73 = vmatprep.subr.mxu0 0.0
    %74 = vmatpush1.msra.mxu0 %v63
    %75 = vmatprep.subr.mxu0 0.0
    %76 = vmatpush1.msra.mxu0 %v62
    %77 = vmatprep.subr.mxu0 0.0
    %78 = vmatpush1.msra.mxu0 %v61
    %79 = vmatprep.subr.mxu0 0.0
    %80 = vmatpush1.msra.mxu0 %v60
    %81 = vmatprep.subr.mxu0 0.0
    %82 = vmatpush1.msra.mxu0 %v59
    %83 = vmatprep.subr.mxu0 0.0
    %84 = vmatpush1.msra.mxu0 %v58
    %85 = vmatprep.subr.mxu0 0.0
    %86 = vmatpush1.msra.mxu0 %v57
    %87 = vmatprep.subr.mxu0 0.0
    %88 = vmatpush1.msra.mxu0 %v56
    %89 = vmatprep.subr.mxu0 0.0
    %90 = vmatpush1.msra.mxu0 %v55
    %91 = vmatprep.subr.mxu0 0.0
    %92 = vmatpush1.msra.mxu0 %v54
    %93 = vmatprep.subr.mxu0 0.0
    %94 = vmatpush1.msra.mxu0 %v53
    %95 = vmatprep.subr.mxu0 0.0
    %96 = vmatpush1.msra.mxu0 %v52
    %97 = vmatprep.subr.mxu0 0.0
    %98 = vmatpush1.msra.mxu0 %v51
    %99 = vmatprep.subr.mxu0 0.0
    %100 = vmatpush2.msra.mxu0 0.0
    %101 = vmatprep.subr.mxu0 0.0
    %102 = vmatpush2.msra.mxu0 0.0
    %103 = vmatprep.subr.mxu0 0.0
    %104 = vmatpush2.msra.mxu0 0.0
    %105 = vmatprep.subr.mxu0 0.0
    %106 = vmatpush2.msra.mxu0 0.0
    %107 = vmatprep.subr.mxu0 0.0
    %108 = vmatpush2.msra.mxu0 0.0
    %109 = vmatprep.subr.mxu0 0.0
    %110 = vmatpush2.msra.mxu0 0.0
    %111 = vmatprep.subr.mxu0 0.0
    %112 = vmatpush2.msra.mxu0 0.0
    %113 = vmatprep.subr.mxu0 0.0
    %114 = vmatpush2.msra.mxu0 0.0
    %115 = vmatprep.subr.mxu0 0.0
    %116 = vmatpush2.msra.mxu0 0.0
    %117 = vmatprep.subr.mxu0 0.0
    %118 = vmatpush2.msra.mxu0 0.0
    %119 = vmatprep.subr.mxu0 0.0
    %120 = vmatpush2.msra.mxu0 0.0
    %121 = vmatprep.subr.mxu0 0.0
    %122 = vmatpush2.msra.mxu0 0.0
    %123 = vmatprep.subr.mxu0 0.0
    %124 = vmatpush2.msra.mxu0 0.0
    %125 = vmatprep.subr.mxu0 0.0
    %126 = vmatpush2.msra.mxu0 0.0
    %127 = vmatprep.subr.mxu0 0.0
    %128 = vmatpush2.msra.mxu0 0.0
    %129 = vmatprep.subr.mxu0 0.0
    %130 = vmatpush2.msra.mxu0 0.0
    %131 = vmatprep.mubr.f32.mxu0 0.0
    %132 = vmatmul.mubr.f32.gmra.mxu0 %v50
    %v133 = vpop.f32.mrf.mxu0
    %v134 = vadd.f32 0.0, %v133
    %v135 = vpop.f32.mrf.mxu0
    %136 = vdwg.mxu0
    %v137 = vld [vmem:[%s1] sm:$0x1]
    %v138 = vld [vmem:[%s3] sm:$0x1]
    %v140 = vlaneseq
    %v141 = vshrl.u32 %v140, 7
    %v142 = vsub.s32 0, %v141
    %v143 = vrot.slane %v137, %v142
    %v145 = vmul.f32 %v50, %v143
    %vm146 = vcmask 1041408
    %v147 = vsel %vm146, %v145, 0.0
    %148 = vadd.xlane.f32.xlu0 %v147
    %v149 = vpop.xlane.xlu0 %148
    %v150 = vmul.f32 %v149, %v143
    %v151 = vadd.f32 %v150, 0.0
    %v153 = vlaneseq
    %v154 = vshrl.u32 %v153, 7
    %v155 = vsub.s32 0, %v154
    %v156 = vrot.slane %v138, %v155
    %v158 = vmul.f32 %v149, %v156
    %v159 = vsub.f32 %v134, %v158
    %v160 = vsub.f32 %v50, %v151
    %161 = vst [vmem:[#allocation7] sm:$0x3] %v160
    %v162 = vld [vmem:[%s4] sm:$0x1]
    %v164 = vlaneseq
    %v165 = vshrl.u32 %v164, 7
    %v166 = vsub.s32 0, %v165
    %v167 = vrot.slane %v162, %v166
    %v169 = vadd.f32 %v159, %v167
    %170 = vst [vmem:[#allocation8] sm:$0x3] %v169
    // Predicated region
    $region30: #{tpu_custom_call.1} parent=1 // pred_check
      _
    $region31: #{tpu_custom_call.1} parent=1 // pred_check_branch
      %172 = sbr.rel (0) target = $region33
    $region32: #{tpu_custom_call.1} parent=1 // pred_region
      %s174 = ssub.s32 32, 32
      %175 = vsyncadd [#allocation4], %s174
      %s177 = sshll.u32 [#allocation7], 4
      %s178 = int_to_ptr.vmem [resolvable:$true] %s177
      %180 = dma.vmem_to_hbm [thread:$0]  %s178, 32, %s5, [#allocation4]
    $region33: #{tpu_custom_call.1} parent=1 // pred_fallthru
      _
    // Predicated region
    $region34: #{tpu_custom_call.1} parent=1 // pred_check
      _
    $region35: #{tpu_custom_call.1} parent=1 // pred_check_branch
      %182 = sbr.rel (0) target = $region37
    $region36: #{tpu_custom_call.1} parent=1 // pred_region
      %s184 = ssub.s32 32, 32
      %185 = vsyncadd [#allocation9], %s184
      %s187 = sshll.u32 [#allocation8], 4
      %s188 = int_to_ptr.vmem [resolvable:$true] %s187
      %190 = dma.vmem_to_hbm [thread:$0]  %s188, 32, %s6, [#allocation9]
    $region37: #{tpu_custom_call.1} parent=1 // pred_fallthru
      _
    // Predicated region
    $region38: #{tpu_custom_call.1} parent=1 // pred_check
      _
    $region39: #{tpu_custom_call.1} parent=1 // pred_check_branch
      %192 = sbr.rel (0) target = $region41
    $region40: #{tpu_custom_call.1} parent=1 // pred_region
      %193 = dma.done [#allocation4], 32
    $region41: #{tpu_custom_call.1} parent=1 // pred_fallthru
      _
    // Predicated region
    $region42: #{tpu_custom_call.1} parent=1 // pred_check
      _
    $region43: #{tpu_custom_call.1} parent=1 // pred_check_branch
      %195 = sbr.rel (0) target = $region45
    $region44: #{tpu_custom_call.1} parent=1 // pred_region
      %196 = dma.done [#allocation9], 32
    $region45: #{tpu_custom_call.1} parent=1 // pred_fallthru
      _
    %197 = vsyncpa [#allocation3], 1
    %198 = vsyncpa [#allocation6], 1
    %199 = vsyncpa [#allocation4], 1
    %200 = vsyncpa [#allocation9], 1

</llo_original>
